<compile_context>
chip_gen: v7x
topology: tpu7x:2x2x1
jax: 0.10.0
libtpu: 0.0.40
codegen_flags: <defaults>
</compile_context>

<pallas_src>
import jax
import jax.numpy as jnp
from jax import lax
from jax.experimental import pallas as pl
from jax.experimental.pallas import tpu as pltpu


def _round_up(x: int, m: int) -> int:
    return (x + m - 1) // m * m


def _tpu_generation():
    """Best-effort TPU generation detection ('v5e' / 'v6e' / 'v7x' / None)."""
    try:
        kind = jax.devices()[0].device_kind.lower()
    except Exception:
        return None
    if "v5 lite" in kind or "v5lite" in kind or "v5e" in kind:
        return "v5e"
    if "v6" in kind:
        return "v6e"
    if "v7" in kind or "7x" in kind:
        return "v7x"
    return None


def _pick_edge_tile(n_pad: int, vmem_limit_bytes: int) -> int:
    """Largest edge tile (multiple of 8) whose working set fits the scoped VMEM limit.

    Accounts for the 128-lane padding of the narrow blocks:
      * resident V block (n_pad, 2) is stored as (n_pad, 128) f32, double-buffered,
      * the (8, n_pad) f32 accumulator output block (x2 buffers),
      * per-tile idx (e_tile, 2) i32 and vals (e_tile, 4) f32 blocks, each lane-padded
        to (e_tile, 128) and double-buffered,
      * ~5 live f32 [e_tile, n_pad] in-kernel temporaries (iota, two masks, inc, prod).
    """
    fixed = n_pad * 128 * 4 * 2 + 8 * n_pad * 4 * 2
    per_row = 5 * n_pad * 4 + 2 * (128 * 4) * 2
    budget = int(vmem_limit_bytes * 0.6) - fixed
    tile = max(8, budget // per_row)
    return max(8, min(2048, (tile // 8) * 8))


def _kcl_kernel(v_ref, idx_ref, val_ref, out_ref):
    """One edge tile: accumulate signed node current flow into out_ref[8, N_pad]."""
    e_step = pl.program_id(1)

    @pl.when(e_step == 0)
    def _():
        out_ref[...] = jnp.zeros_like(out_ref)

    e_tile = idx_ref.shape[0]
    n_pad = v_ref.shape[0]

    # Signed incidence (edges on sublanes, nodes on lanes): +1 at dst(e), -1 at src(e).
    # Values are exactly -1/0/+1; src == dst (self loops, padded rows) gives 0.
    node_ids = lax.broadcasted_iota(jnp.int32, (e_tile, n_pad), 1)
    src = idx_ref[:, 0:1]
    dst = idx_ref[:, 1:2]
    inc = (node_ids == dst).astype(jnp.float32) - (node_ids == src).astype(jnp.float32)

    # Gather endpoint voltage differences on the MXU: d = V_dst - V_src, [e_tile, 2].
    # precision=HIGHEST keeps V at f32 precision inside the MXU (default precision can
    # truncate to bf16); the sign of d is irrelevant since only dr^2 + di^2 is used.
    d = jnp.dot(
        inc,
        v_ref[...],
        preferred_element_type=jnp.float32,
        precision=lax.Precision.HIGHEST,
    )
    dr = d[:, 0:1]
    di = d[:, 1:2]

    # |V_dst - V_src| / |Z + 1e-6| (eps on the real part only, matching
    # torch.complex(R, X) + 1e-6), weighted by the edge probability.
    prob = val_ref[:, 0:1]
    r = val_ref[:, 1:2]
    x = val_ref[:, 2:3]
    inv_abs_z = lax.rsqrt((r + 1e-6) ** 2 + x * x)              # EUP rsqrt
    weighted = jnp.sqrt(dr * dr + di * di) * inv_abs_z * prob   # [e_tile, 1]

    # Scatter back onto nodes on the VPU: multiply, then fold the edge (sublane) axis
    # into 8 accumulator rows with plain vreg adds (no MXU, no per-tile cross-sublane
    # fold; the final 8 -> 1 fold happens in the jnp epilogue).
    prod = weighted * inc                                        # [e_tile, n_pad]
    out_ref[...] += jnp.sum(prod.reshape(e_tile // 8, 8, n_pad), axis=0)


def kirchhoff_current_law(node_features, edge_index, edge_probs, edge_params,
                          n_splits: int | None = None):
    """JAX/Pallas equivalent of KirchhoffCurrentLaw.forward (tolerance unused)."""
    node_features = jnp.asarray(node_features, jnp.float32)
    n_nodes = int(node_features.shape[0])
    n_edges = int(edge_index.shape[1])
    if n_edges == 0:
        return jnp.float32(0.0)

    # --- generation-aware launch parameters ---------------------------------
    gen = _tpu_generation()
    if n_splits is None:
        n_splits = 2 if gen == "v7x" else 1       # split only pays off with 2 TCs
    vmem_limit = {"v5e": 64 << 20, "v6e": 64 << 20, "v7x": 48 << 20}.get(gen, 32 << 20)

    # --- pad / pack inputs ----------------------------------------------------
    n_pad = _round_up(max(n_nodes, 1), 128)
    v = jnp.zeros((n_pad, 2), jnp.float32).at[:n_nodes, :].set(node_features[:, 0:2])

    e_per_split = pl.cdiv(n_edges, n_splits)
    e_tile = min(_pick_edge_tile(n_pad, vmem_limit), _round_up(e_per_split, 8))
    n_tiles = pl.cdiv(e_per_split, e_tile)
    e_pad = n_splits * n_tiles * e_tile

    src = jnp.asarray(edge_index[0], jnp.int32)
    dst = jnp.asarray(edge_index[1], jnp.int32)
    idx = jnp.zeros((e_pad, 2), jnp.int32)
    idx = idx.at[:n_edges, 0].set(src).at[:n_edges, 1].set(dst)

    vals = jnp.zeros((e_pad, 4), jnp.float32)
    vals = vals.at[:n_edges, 0].set(jnp.asarray(edge_probs, jnp.float32))
    vals = vals.at[:n_edges, 1].set(jnp.asarray(edge_params[:, 0], jnp.float32))
    vals = vals.at[:n_edges, 2].set(jnp.asarray(edge_params[:, 1], jnp.float32))
    # Padded edges: src = dst = 0 and prob = 0  -> contribute exactly zero.

    # --- kernel launch --------------------------------------------------------
    partial = pl.pallas_call(
        _kcl_kernel,
        out_shape=jax.ShapeDtypeStruct((n_splits * 8, n_pad), jnp.float32),
        grid_spec=pltpu.PrefetchScalarGridSpec(
            num_scalar_prefetch=0,
            grid=(n_splits, n_tiles),
            in_specs=[
                pl.BlockSpec((n_pad, 2), lambda c, e: (0, 0)),                 # resident V
                pl.BlockSpec((e_tile, 2), lambda c, e: (c * n_tiles + e, 0)),  # src/dst
                pl.BlockSpec((e_tile, 4), lambda c, e: (c * n_tiles + e, 0)),  # prob/R/X
            ],
            out_specs=pl.BlockSpec((8, n_pad), lambda c, e: (c, 0)),           # 8-row acc / split
        ),
        compiler_params=pltpu.CompilerParams(
            dimension_semantics=("parallel", "arbitrary"),
            vmem_limit_bytes=vmem_limit,
        ),
    )(v, idx, vals)

    # Epilogue: combine the per-split / per-fold-row partial flows, square, mean over
    # the TRUE node count.  Padded node columns are exactly zero, so the sum is safe.
    flow = jnp.sum(partial, axis=0)
    return jnp.sum(flow * flow) / jnp.float32(n_nodes)


def _reference(node_features, edge_index, edge_probs, edge_params):
    """Pure-JAX reference matching the PyTorch loop semantics."""
    src = edge_index[0]
    dst = edge_index[1]
    vf = node_features[src, 0] + 1j * node_features[src, 1]
    vt = node_features[dst, 0] + 1j * node_features[dst, 1]
    z = (edge_params[:, 0] + 1e-6) + 1j * edge_params[:, 1]
    cur = jnp.abs((vf - vt) / z) * edge_probs
    n = node_features.shape[0]
    flow = jnp.zeros((n,), jnp.float32).at[dst].add(cur).at[src].add(-cur)
    return jnp.mean(flow ** 2)


if __name__ == "__main__":
    key = jax.random.PRNGKey(0)
    k1, k2, k3, k4, k5 = jax.random.split(key, 5)

    N, F, E = 8, 4, 16
    node_features = jax.random.normal(k1, (N, F), dtype=jnp.float32)
    edge_index = jnp.stack(
        [
            jax.random.randint(k2, (E,), 0, N, dtype=jnp.int32),
            jax.random.randint(k3, (E,), 0, N, dtype=jnp.int32),
        ],
        axis=0,
    )                                                                   # [2, E]
    edge_probs = jax.random.uniform(k4, (E,), dtype=jnp.float32)        # [E]
    edge_params = jax.random.uniform(
        k5, (E, 2), dtype=jnp.float32, minval=0.1, maxval=1.0
    )                                                                   # [E, 2] (R, X)

    loss = kirchhoff_current_law(node_features, edge_index, edge_probs, edge_params)
    loss = jax.block_until_ready(loss)

    ref = _reference(node_features, edge_index, edge_probs, edge_params)
    assert jnp.allclose(loss, ref, rtol=1e-5, atol=1e-5), (loss, ref)

    print("KERNEL_OK")
</pallas_src>

<mosaic_0001>
module attributes {stable_mosaic.version = 11 : i64} {
  func.func @_kcl_kernel(%arg0: i32, %arg1: i32, %arg2: memref<128x2xf32, #tpu.memory_space<vmem>>, %arg3: memref<16x2xi32, #tpu.memory_space<vmem>>, %arg4: memref<16x4xf32, #tpu.memory_space<vmem>>, %arg5: memref<8x128xf32, #tpu.memory_space<vmem>>) attributes {dimension_semantics = [#tpu.dimension_semantics<parallel>, #tpu.dimension_semantics<arbitrary>], iteration_bounds = array<i64: 1, 1>, scalar_prefetch = 0 : i64, scratch_operands = 0 : i64, tpu.core_type = #tpu.core_type<tc>, window_params = [{pipeline_mode = #tpu.pipeline_mode<synchronous>, transform_indices = @transform_0, window_bounds = array<i64: 128, 2>}, {transform_indices = @transform_1, window_bounds = array<i64: 16, 2>}, {transform_indices = @transform_2, window_bounds = array<i64: 16, 4>}, {transform_indices = @transform_3, window_bounds = array<i64: 8, 128>}]} {
    %c0_i32 = arith.constant 0 : i32
    %0 = arith.cmpi eq, %arg1, %c0_i32 : i32
    %1 = arith.extui %0 : i1 to i32
    %c0_i32_0 = arith.constant 0 : i32
    %2 = arith.cmpi ne, %1, %c0_i32_0 : i32
    scf.if %2 {
      %cst_16 = arith.constant 0.000000e+00 : f32
      %41 = vector.broadcast %cst_16 : f32 to vector<8x128xf32>
      %c0_17 = arith.constant 0 : index
      %c0_18 = arith.constant 0 : index
      %42 = vector.load %arg5[%c0_17, %c0_18] : memref<8x128xf32, #tpu.memory_space<vmem>>, vector<8x128xf32>
      tpu.vector_store %arg5[%c0_17, %c0_18], %41 {strides = array<i32>} : memref<8x128xf32, #tpu.memory_space<vmem>>, vector<8x128xf32>,
    } else {
    }
    %3 = tpu.iota {dimensions = array<i32: 1>} : vector<16x128xi32>
    %c0 = arith.constant 0 : index
    %c0_1 = arith.constant 0 : index
    %4 = vector.load %arg3[%c0, %c0_1] : memref<16x2xi32, #tpu.memory_space<vmem>>, vector<16x1xi32>
    %c0_2 = arith.constant 0 : index
    %c1 = arith.constant 1 : index
    %5 = vector.load %arg3[%c0_2, %c1] : memref<16x2xi32, #tpu.memory_space<vmem>>, vector<16x1xi32>
    %6 = vector.broadcast %5 : vector<16x1xi32> to vector<16x128xi32>
    %7 = arith.cmpi eq, %3, %6 : vector<16x128xi32>
    %8 = arith.extui %7 : vector<16x128xi1> to vector<16x128xi32>
    %9 = arith.sitofp %8 : vector<16x128xi32> to vector<16x128xf32>
    %10 = vector.broadcast %4 : vector<16x1xi32> to vector<16x128xi32>
    %11 = arith.cmpi eq, %3, %10 : vector<16x128xi32>
    %12 = arith.extui %11 : vector<16x128xi1> to vector<16x128xi32>
    %13 = arith.sitofp %12 : vector<16x128xi32> to vector<16x128xf32>
    %14 = arith.subf %9, %13 : vector<16x128xf32>
    %c0_3 = arith.constant 0 : index
    %c0_4 = arith.constant 0 : index
    %15 = vector.load %arg2[%c0_3, %c0_4] : memref<128x2xf32, #tpu.memory_space<vmem>>, vector<128x2xf32>
    %cst = arith.constant dense<0.000000e+00> : vector<16x2xf32>
    %16 = tpu.matmul %14, %15, %cst {dimension_numbers = #tpu.dot_dimension_numbers<[1], [0], [0], [1], [0, 0, 1, 1], [], []>, precision = #tpu.contract_precision<fp32>} : vector<16x128xf32>, vector<128x2xf32>, vector<16x2xf32> -> vector<16x2xf32>
    %17 = vector.extract_strided_slice %16 {offsets = [0, 0], sizes = [16, 1], strides = [1, 1]} : vector<16x2xf32> to vector<16x1xf32>
    %18 = vector.extract_strided_slice %16 {offsets = [0, 1], sizes = [16, 1], strides = [1, 1]} : vector<16x2xf32> to vector<16x1xf32>
    %c0_5 = arith.constant 0 : index
    %c0_6 = arith.constant 0 : index
    %19 = vector.load %arg4[%c0_5, %c0_6] : memref<16x4xf32, #tpu.memory_space<vmem>>, vector<16x1xf32>
    %c0_7 = arith.constant 0 : index
    %c1_8 = arith.constant 1 : index
    %20 = vector.load %arg4[%c0_7, %c1_8] : memref<16x4xf32, #tpu.memory_space<vmem>>, vector<16x1xf32>
    %c0_9 = arith.constant 0 : index
    %c2 = arith.constant 2 : index
    %21 = vector.load %arg4[%c0_9, %c2] : memref<16x4xf32, #tpu.memory_space<vmem>>, vector<16x1xf32>
    %cst_10 = arith.constant 9.99999997E-7 : f32
    %22 = vector.broadcast %cst_10 : f32 to vector<16x1xf32>
    %23 = arith.addf %20, %22 : vector<16x1xf32>
    %24 = arith.mulf %23, %23 : vector<16x1xf32>
    %25 = arith.mulf %21, %21 : vector<16x1xf32>
    %26 = arith.addf %24, %25 : vector<16x1xf32>
    %27 = math.rsqrt %26 : vector<16x1xf32>
    %28 = arith.mulf %17, %17 : vector<16x1xf32>
    %29 = arith.mulf %18, %18 : vector<16x1xf32>
    %30 = arith.addf %28, %29 : vector<16x1xf32>
    %31 = math.sqrt %30 : vector<16x1xf32>
    %32 = arith.mulf %31, %27 : vector<16x1xf32>
    %33 = arith.mulf %32, %19 : vector<16x1xf32>
    %34 = vector.broadcast %33 : vector<16x1xf32> to vector<16x128xf32>
    %35 = arith.mulf %34, %14 : vector<16x128xf32>
    %c0_11 = arith.constant 0 : index
    %c0_12 = arith.constant 0 : index
    %36 = vector.load %arg5[%c0_11, %c0_12] : memref<8x128xf32, #tpu.memory_space<vmem>>, vector<8x128xf32>
    %37 = vector.shape_cast %35 : vector<16x128xf32> to vector<2x8x128xf32>
    %cst_13 = arith.constant dense<0.000000e+00> : vector<8x128xf32>
    %38 = vector.multi_reduction <add>, %37, %cst_13 [0] : vector<2x8x128xf32> to vector<8x128xf32>
    %39 = arith.addf %36, %38 : vector<8x128xf32>
    %c0_14 = arith.constant 0 : index
    %c0_15 = arith.constant 0 : index
    %40 = vector.load %arg5[%c0_14, %c0_15] : memref<8x128xf32, #tpu.memory_space<vmem>>, vector<8x128xf32>
    tpu.vector_store %arg5[%c0_14, %c0_15], %39 {strides = array<i32>} : memref<8x128xf32, #tpu.memory_space<vmem>>, vector<8x128xf32>,
    return
  }
  func.func @transform_0(%arg0: i32, %arg1: i32) -> (i32, i32) {
    %c0_i32 = arith.constant 0 : i32
    %c0_i32_0 = arith.constant 0 : i32
    %c0_i32_1 = arith.constant 0 : i32
    return %c0_i32, %c0_i32_0 : i32, i32
  }
  func.func @transform_1(%arg0: i32, %arg1: i32) -> (i32, i32) {
    %c1_i32 = arith.constant 1 : i32
    %0 = arith.muli %arg0, %c1_i32 : i32
    %1 = arith.addi %0, %arg1 : i32
    %c0_i32 = arith.constant 0 : i32
    %c0_i32_0 = arith.constant 0 : i32
    return %1, %c0_i32 : i32, i32
  }
  func.func @transform_2(%arg0: i32, %arg1: i32) -> (i32, i32) {
    %c1_i32 = arith.constant 1 : i32
    %0 = arith.muli %arg0, %c1_i32 : i32
    %1 = arith.addi %0, %arg1 : i32
    %c0_i32 = arith.constant 0 : i32
    %c0_i32_0 = arith.constant 0 : i32
    return %1, %c0_i32 : i32, i32
  }
  func.func @transform_3(%arg0: i32, %arg1: i32) -> (i32, i32) {
    %c0_i32 = arith.constant 0 : i32
    %c0_i32_0 = arith.constant 0 : i32
    return %arg0, %c0_i32 : i32, i32
  }
}

</mosaic_0001>

<llo_original>
// kernel: tpu_custom_call.1
$region0: #{tpu_custom_call.1}
  #allocation0 [shape = 'u32[]', space=smem, size = 0x4, offset = 0x4, fixed_abs, tag = 'smem constant byte address 0x4 - core index']
  #allocation1 [shape = 'u32[144,128]{1,0:T(1,128)}', space=vmem, size = 0x12000, scoped, tag = 'internal scratch']
  %s0 = inlined_call_operand.vmem [shape: f32[128,2], index: 0, kind: input, shape index: {}]
  %s1 = inlined_call_operand.vmem [shape: s32[16,2], index: 1, kind: input, shape index: {}]
  %s2 = inlined_call_operand.vmem [shape: f32[16,4], index: 2, kind: input, shape index: {}]
  %s3 = inlined_call_operand.hbm [shape: f32[8,128], index: 3, kind: output, shape index: {}]
  %s4 = sld [smem:[#allocation0]]
  $region26: #{tpu_custom_call.1} parent=0
    _
  %s6 = ssub.s32 1, %s4
  %s7 = scalar_select 0, %s6, %s4
  $region1: #{tpu_custom_call.1} parent=0
    #allocation2 [shape = 'u8[4096]{0}', space=vmem, size = 0x1000, scoped, tag = 'output window, operand 0, single buffered']
    #allocation3 [shape = 's32[1]{0}', space=sflag, size = 0x4, scoped, tag = 'scoped memory for tpu_custom_call.1']
    %8 = vsyncpa [#allocation3], 0
    // Predicated region
    $region2: #{tpu_custom_call.1} parent=1 // pred_check
      _
    $region3: #{tpu_custom_call.1} parent=1 // pred_check_branch
      %10 = sbr.rel (0) target = $region5
    $region4: #{tpu_custom_call.1} parent=1 // pred_region
      _
    $region5: #{tpu_custom_call.1} parent=1 // pred_fallthru
      _
    // Predicated region
    $region6: #{tpu_custom_call.1} parent=1 // pred_check
      _
    $region7: #{tpu_custom_call.1} parent=1 // pred_check_branch
      %12 = sbr.rel (0) target = $region9
    $region8: #{tpu_custom_call.1} parent=1 // pred_region
      %s13 = sadd.s32 0, 0
      %s14 = smul.u32 2, %s13
      %p15 = scmp.lt.s32.totalorder %s14, 1
      %s16 = scalar_select %p15, %s14, 1
      %s17 = smul.addr %s16, 8
      %s18 = scalar_lea.vmem %s1, %s17
      %s19 = sadd.s32 0, 0
      %s20 = smul.u32 2, %s19
    $region9: #{tpu_custom_call.1} parent=1 // pred_fallthru
      _
    // Predicated region
    $region10: #{tpu_custom_call.1} parent=1 // pred_check
      _
    $region11: #{tpu_custom_call.1} parent=1 // pred_check_branch
      %22 = sbr.rel (0) target = $region13
    $region12: #{tpu_custom_call.1} parent=1 // pred_region
      %s23 = sadd.s32 0, 0
      %s24 = smul.u32 2, %s23
      %p25 = scmp.lt.s32.totalorder %s24, 1
      %s26 = scalar_select %p25, %s24, 1
      %s27 = smul.addr %s26, 8
      %s28 = scalar_lea.vmem %s2, %s27
      %s29 = sadd.s32 0, 0
      %s30 = smul.u32 2, %s29
    $region13: #{tpu_custom_call.1} parent=1 // pred_fallthru
      _
    %s31 = sadd.s32 0, 0
    %s32 = smul.u32 2, %s31
    %p33 = scmp.lt.s32.totalorder %s32, 1
    %s34 = scalar_select %p33, %s32, 1
    %s35 = smul.addr %s34, 8
    %s36 = scalar_lea.vmem %s1, %s35
    %s37 = sadd.s32 0, 0
    %s38 = smul.u32 2, %s37
    %p39 = scmp.lt.s32.totalorder %s38, 1
    %s40 = scalar_select %p39, %s38, 1
    %s41 = smul.addr %s40, 8
    %s42 = scalar_lea.vmem %s2, %s41
    %s43 = sadd.s32 0, 0
    %s44 = smul.u32 2, %s43
    %p45 = scmp.lt.s32.totalorder %s44, 1
    %s46 = scalar_select %p45, %s44, 1
    %s47 = smul.addr %s46, 8
    %s48 = scalar_lea.vmem %s1, %s47
    %s49 = sadd.s32 0, 0
    %s50 = smul.u32 2, %s49
    %s51 = sadd.s32 0, 0
    %s52 = smul.u32 2, %s51
    %p53 = scmp.lt.s32.totalorder %s52, 1
    %s54 = scalar_select %p53, %s52, 1
    %s55 = smul.addr %s54, 8
    %s56 = scalar_lea.vmem %s2, %s55
    %s57 = sadd.s32 0, 0
    %s58 = smul.u32 2, %s57
    %p59 = scmp.eq.s32.totalorder 0, 0
    // Predicated region
    $region14: #{tpu_custom_call.1} parent=1 // pred_check
      %p60 = pneg %p59
    $region15: #{tpu_custom_call.1} parent=1 // pred_check_branch
      %62 = sbr.rel (%p60) target = $region17
    $region16: #{tpu_custom_call.1} parent=1 // pred_region
      %63 = vst [vmem:[#allocation2] sm:$0xff] 0.0
    $region17: #{tpu_custom_call.1} parent=1 // pred_fallthru
      _
    %v64 = vlaneseq
    %v65 = vand.u32 %v64, 127
    %v66 = vld [vmem:[%s48] sm:$0xff]
    %v67 = vld [vmem:[%s48 + $0x8] sm:$0xff]
    %68 = vset.pattern.permute.xlu0 1
    %69 = vperm.xlu0 %68, %v66
    %v70 = vpop.permute.xlu0 %69
    %71 = vset.pattern.permute.xlu0 1
    %72 = vperm.xlu0 %71, %v67
    %v73 = vpop.permute.xlu0 %72
    %vm74 = vcmp.eq.s32.totalorder %v65, %v70
    %vm75 = vcmp.eq.s32.totalorder %v65, %v73
    %v76 = vsel %vm74, 1, 0
    %v77 = vsel %vm75, 1, 0
    %v78 = vcvt.s32.f32 %v76
    %v79 = vcvt.s32.f32 %v77
    %80 = vset.pattern.permute.xlu0 0
    %81 = vperm.xlu0 %80, %v66
    %v82 = vpop.permute.xlu0 %81
    %83 = vset.pattern.permute.xlu0 0
    %84 = vperm.xlu0 %83, %v67
    %v85 = vpop.permute.xlu0 %84
    %vm86 = vcmp.eq.s32.totalorder %v65, %v82
    %vm87 = vcmp.eq.s32.totalorder %v65, %v85
    %v88 = vsel %vm86, 1, 0
    %v89 = vsel %vm87, 1, 0
    %v90 = vcvt.s32.f32 %v88
    %v91 = vcvt.s32.f32 %v89
    %v92 = vsub.f32 %v78, %v90
    %v93 = vsub.f32 %v79, %v91
    %v94 = vld [vmem:[%s0] sm:$0xff]
    %v95 = vld [vmem:[%s0 + $0x8] sm:$0xff]
    %v96 = vld [vmem:[%s0 + $0x10] sm:$0xff]
    %v97 = vld [vmem:[%s0 + $0x18] sm:$0xff]
    %v98 = vld [vmem:[%s0 + $0x20] sm:$0xff]
    %v99 = vld [vmem:[%s0 + $0x28] sm:$0xff]
    %v100 = vld [vmem:[%s0 + $0x30] sm:$0xff]
    %v101 = vld [vmem:[%s0 + $0x38] sm:$0xff]
    %v102 = vld [vmem:[%s0 + $0x40] sm:$0xff]
    %v103 = vld [vmem:[%s0 + $0x48] sm:$0xff]
    %v104 = vld [vmem:[%s0 + $0x50] sm:$0xff]
    %v105 = vld [vmem:[%s0 + $0x58] sm:$0xff]
    %v106 = vld [vmem:[%s0 + $0x60] sm:$0xff]
    %v107 = vld [vmem:[%s0 + $0x68] sm:$0xff]
    %v108 = vld [vmem:[%s0 + $0x70] sm:$0xff]
    %v109 = vld [vmem:[%s0 + $0x78] sm:$0xff]
    %110 = vmatprep.subr.mxu0 0.0
    %v111 = vand.u32 %v94, 4294901760
    %112 = vmatpush1.msra.mxu0 %v111
    %113 = vmatprep.subr.mxu0 0.0
    %v114 = vand.u32 %v95, 4294901760
    %115 = vmatpush1.msra.mxu0 %v114
    %116 = vmatprep.subr.mxu0 0.0
    %v117 = vand.u32 %v96, 4294901760
    %118 = vmatpush1.msra.mxu0 %v117
    %119 = vmatprep.subr.mxu0 0.0
    %v120 = vand.u32 %v97, 4294901760
    %121 = vmatpush1.msra.mxu0 %v120
    %122 = vmatprep.subr.mxu0 0.0
    %v123 = vand.u32 %v98, 4294901760
    %124 = vmatpush1.msra.mxu0 %v123
    %125 = vmatprep.subr.mxu0 0.0
    %v126 = vand.u32 %v99, 4294901760
    %127 = vmatpush1.msra.mxu0 %v126
    %128 = vmatprep.subr.mxu0 0.0
    %v129 = vand.u32 %v100, 4294901760
    %130 = vmatpush1.msra.mxu0 %v129
    %131 = vmatprep.subr.mxu0 0.0
    %v132 = vand.u32 %v101, 4294901760
    %133 = vmatpush1.msra.mxu0 %v132
    %134 = vmatprep.subr.mxu0 0.0
    %v135 = vand.u32 %v102, 4294901760
    %136 = vmatpush1.msra.mxu0 %v135
    %137 = vmatprep.subr.mxu0 0.0
    %v138 = vand.u32 %v103, 4294901760
    %139 = vmatpush1.msra.mxu0 %v138
    %140 = vmatprep.subr.mxu0 0.0
    %v141 = vand.u32 %v104, 4294901760
    %142 = vmatpush1.msra.mxu0 %v141
    %143 = vmatprep.subr.mxu0 0.0
    %v144 = vand.u32 %v105, 4294901760
    %145 = vmatpush1.msra.mxu0 %v144
    %146 = vmatprep.subr.mxu0 0.0
    %v147 = vand.u32 %v106, 4294901760
    %148 = vmatpush1.msra.mxu0 %v147
    %149 = vmatprep.subr.mxu0 0.0
    %v150 = vand.u32 %v107, 4294901760
    %151 = vmatpush1.msra.mxu0 %v150
    %152 = vmatprep.subr.mxu0 0.0
    %v153 = vand.u32 %v108, 4294901760
    %154 = vmatpush1.msra.mxu0 %v153
    %155 = vmatprep.subr.mxu0 0.0
    %v156 = vand.u32 %v109, 4294901760
    %157 = vmatpush1.msra.mxu0 %v156
    %158 = vmatprep.subr.mxu0 0.0
    %159 = vmatpush1.msra.mxu0 0.0
    %160 = vmatprep.subr.mxu0 0.0
    %161 = vmatpush1.msra.mxu0 0.0
    %162 = vmatprep.subr.mxu0 0.0
    %163 = vmatpush1.msra.mxu0 0.0
    %164 = vmatprep.subr.mxu0 0.0
    %165 = vmatpush1.msra.mxu0 0.0
    %166 = vmatprep.subr.mxu0 0.0
    %167 = vmatpush1.msra.mxu0 0.0
    %168 = vmatprep.subr.mxu0 0.0
    %169 = vmatpush1.msra.mxu0 0.0
    %170 = vmatprep.subr.mxu0 0.0
    %171 = vmatpush1.msra.mxu0 0.0
    %172 = vmatprep.subr.mxu0 0.0
    %173 = vmatpush1.msra.mxu0 0.0
    %174 = vmatprep.subr.mxu0 0.0
    %175 = vmatpush1.msra.mxu0 0.0
    %176 = vmatprep.subr.mxu0 0.0
    %177 = vmatpush1.msra.mxu0 0.0
    %178 = vmatprep.subr.mxu0 0.0
    %179 = vmatpush1.msra.mxu0 0.0
    %180 = vmatprep.subr.mxu0 0.0
    %181 = vmatpush1.msra.mxu0 0.0
    %182 = vmatprep.subr.mxu0 0.0
    %183 = vmatpush1.msra.mxu0 0.0
    %184 = vmatprep.subr.mxu0 0.0
    %185 = vmatpush1.msra.mxu0 0.0
    %186 = vmatprep.subr.mxu0 0.0
    %187 = vmatpush1.msra.mxu0 0.0
    %188 = vmatprep.subr.mxu0 0.0
    %189 = vmatpush1.msra.mxu0 0.0
    %190 = vmatprep.mubr.f32.mxu0 0.0
    %v191 = vand.u32 %v92, 4294901760
    %v192 = vsub.f32 %v92, %v191
    %v193 = vand.u32 %v192, 4294901760
    %v194 = vsub.f32 %v192, %v193
    %v195 = vand.u32 %v194, 4294901760
    %196 = vmatmul.mubr.f32.gmra.mrb[0].mxu0 %v195
    %v197 = vpop.f32.mrb[0].mxu0
    %v198 = vadd.f32 0.0, %v197
    %v199 = vpop.f32.mrb[0].mxu0
    %200 = vmatprep.mubr.f32.mxu0 0.0
    %v201 = vand.u32 %v93, 4294901760
    %v202 = vsub.f32 %v93, %v201
    %v203 = vand.u32 %v202, 4294901760
    %v204 = vsub.f32 %v202, %v203
    %v205 = vand.u32 %v204, 4294901760
    %206 = vmatmul.mubr.f32.gmra.mrb[0].mxu0 %v205
    %v207 = vpop.f32.mrb[0].mxu0
    %v208 = vadd.f32 0.0, %v207
    %v209 = vpop.f32.mrb[0].mxu0
    %210 = vdwg.mxu0
    %211 = vmatprep.subr.mxu0 0.0
    %v212 = vand.u32 %v94, 4294901760
    %v213 = vsub.f32 %v94, %v212
    %v214 = vand.u32 %v213, 4294901760
    %v215 = vsub.f32 %v213, %v214
    %v216 = vand.u32 %v215, 4294901760
    %217 = vmatpush1.msra.mxu0 %v216
    %218 = vmatprep.subr.mxu0 0.0
    %v219 = vand.u32 %v95, 4294901760
    %v220 = vsub.f32 %v95, %v219
    %v221 = vand.u32 %v220, 4294901760
    %v222 = vsub.f32 %v220, %v221
    %v223 = vand.u32 %v222, 4294901760
    %224 = vmatpush1.msra.mxu0 %v223
    %225 = vmatprep.subr.mxu0 0.0
    %v226 = vand.u32 %v96, 4294901760
    %v227 = vsub.f32 %v96, %v226
    %v228 = vand.u32 %v227, 4294901760
    %v229 = vsub.f32 %v227, %v228
    %v230 = vand.u32 %v229, 4294901760
    %231 = vmatpush1.msra.mxu0 %v230
    %232 = vmatprep.subr.mxu0 0.0
    %v233 = vand.u32 %v97, 4294901760
    %v234 = vsub.f32 %v97, %v233
    %v235 = vand.u32 %v234, 4294901760
    %v236 = vsub.f32 %v234, %v235
    %v237 = vand.u32 %v236, 4294901760
    %238 = vmatpush1.msra.mxu0 %v237
    %239 = vmatprep.subr.mxu0 0.0
    %v240 = vand.u32 %v98, 4294901760
    %v241 = vsub.f32 %v98, %v240
    %v242 = vand.u32 %v241, 4294901760
    %v243 = vsub.f32 %v241, %v242
    %v244 = vand.u32 %v243, 4294901760
    %245 = vmatpush1.msra.mxu0 %v244
    %246 = vmatprep.subr.mxu0 0.0
    %v247 = vand.u32 %v99, 4294901760
    %v248 = vsub.f32 %v99, %v247
    %v249 = vand.u32 %v248, 4294901760
    %v250 = vsub.f32 %v248, %v249
    %v251 = vand.u32 %v250, 4294901760
    %252 = vmatpush1.msra.mxu0 %v251
    %253 = vmatprep.subr.mxu0 0.0
    %v254 = vand.u32 %v100, 4294901760
    %v255 = vsub.f32 %v100, %v254
    %v256 = vand.u32 %v255, 4294901760
    %v257 = vsub.f32 %v255, %v256
    %v258 = vand.u32 %v257, 4294901760
    %259 = vmatpush1.msra.mxu0 %v258
    %260 = vmatprep.subr.mxu0 0.0
    %v261 = vand.u32 %v101, 4294901760
    %v262 = vsub.f32 %v101, %v261
    %v263 = vand.u32 %v262, 4294901760
    %v264 = vsub.f32 %v262, %v263
    %v265 = vand.u32 %v264, 4294901760
    %266 = vmatpush1.msra.mxu0 %v265
    %267 = vmatprep.subr.mxu0 0.0
    %v268 = vand.u32 %v102, 4294901760
    %v269 = vsub.f32 %v102, %v268
    %v270 = vand.u32 %v269, 4294901760
    %v271 = vsub.f32 %v269, %v270
    %v272 = vand.u32 %v271, 4294901760
    %273 = vmatpush1.msra.mxu0 %v272
    %274 = vmatprep.subr.mxu0 0.0
    %v275 = vand.u32 %v103, 4294901760
    %v276 = vsub.f32 %v103, %v275
    %v277 = vand.u32 %v276, 4294901760
    %v278 = vsub.f32 %v276, %v277
    %v279 = vand.u32 %v278, 4294901760
    %280 = vmatpush1.msra.mxu0 %v279
    %281 = vmatprep.subr.mxu0 0.0
    %v282 = vand.u32 %v104, 4294901760
    %v283 = vsub.f32 %v104, %v282
    %v284 = vand.u32 %v283, 4294901760
    %v285 = vsub.f32 %v283, %v284
    %v286 = vand.u32 %v285, 4294901760
    %287 = vmatpush1.msra.mxu0 %v286
    %288 = vmatprep.subr.mxu0 0.0
    %v289 = vand.u32 %v105, 4294901760
    %v290 = vsub.f32 %v105, %v289
    %v291 = vand.u32 %v290, 4294901760
    %v292 = vsub.f32 %v290, %v291
    %v293 = vand.u32 %v292, 4294901760
    %294 = vmatpush1.msra.mxu0 %v293
    %295 = vmatprep.subr.mxu0 0.0
    %v296 = vand.u32 %v106, 4294901760
    %v297 = vsub.f32 %v106, %v296
    %v298 = vand.u32 %v297, 4294901760
    %v299 = vsub.f32 %v297, %v298
    %v300 = vand.u32 %v299, 4294901760
    %301 = vmatpush1.msra.mxu0 %v300
    %302 = vmatprep.subr.mxu0 0.0
    %v303 = vand.u32 %v107, 4294901760
    %v304 = vsub.f32 %v107, %v303
    %v305 = vand.u32 %v304, 4294901760
    %v306 = vsub.f32 %v304, %v305
    %v307 = vand.u32 %v306, 4294901760
    %308 = vmatpush1.msra.mxu0 %v307
    %309 = vmatprep.subr.mxu0 0.0
    %v310 = vand.u32 %v108, 4294901760
    %v311 = vsub.f32 %v108, %v310
    %v312 = vand.u32 %v311, 4294901760
    %v313 = vsub.f32 %v311, %v312
    %v314 = vand.u32 %v313, 4294901760
    %315 = vmatpush1.msra.mxu0 %v314
    %316 = vmatprep.subr.mxu0 0.0
    %v317 = vand.u32 %v109, 4294901760
    %v318 = vsub.f32 %v109, %v317
    %v319 = vand.u32 %v318, 4294901760
    %v320 = vsub.f32 %v318, %v319
    %v321 = vand.u32 %v320, 4294901760
    %322 = vmatpush1.msra.mxu0 %v321
    %323 = vmatprep.subr.mxu0 0.0
    %324 = vmatpush1.msra.mxu0 0.0
    %325 = vmatprep.subr.mxu0 0.0
    %326 = vmatpush1.msra.mxu0 0.0
    %327 = vmatprep.subr.mxu0 0.0
    %328 = vmatpush1.msra.mxu0 0.0
    %329 = vmatprep.subr.mxu0 0.0
    %330 = vmatpush1.msra.mxu0 0.0
    %331 = vmatprep.subr.mxu0 0.0
    %332 = vmatpush1.msra.mxu0 0.0
    %333 = vmatprep.subr.mxu0 0.0
    %334 = vmatpush1.msra.mxu0 0.0
    %335 = vmatprep.subr.mxu0 0.0
    %336 = vmatpush1.msra.mxu0 0.0
    %337 = vmatprep.subr.mxu0 0.0
    %338 = vmatpush1.msra.mxu0 0.0
    %339 = vmatprep.subr.mxu0 0.0
    %340 = vmatpush1.msra.mxu0 0.0
    %341 = vmatprep.subr.mxu0 0.0
    %342 = vmatpush1.msra.mxu0 0.0
    %343 = vmatprep.subr.mxu0 0.0
    %344 = vmatpush1.msra.mxu0 0.0
    %345 = vmatprep.subr.mxu0 0.0
    %346 = vmatpush1.msra.mxu0 0.0
    %347 = vmatprep.subr.mxu0 0.0
    %348 = vmatpush1.msra.mxu0 0.0
    %349 = vmatprep.subr.mxu0 0.0
    %350 = vmatpush1.msra.mxu0 0.0
    %351 = vmatprep.subr.mxu0 0.0
    %352 = vmatpush1.msra.mxu0 0.0
    %353 = vmatprep.subr.mxu0 0.0
    %354 = vmatpush1.msra.mxu0 0.0
    %355 = vmatprep.mubr.f32.mxu0 0.0
    %v356 = vand.u32 %v92, 4294901760
    %357 = vmatmul.mubr.f32.gmra.mrb[0].mxu0 %v356
    %v358 = vpop.f32.mrb[0].mxu0
    %v359 = vadd.f32 %v198, %v358
    %v360 = vpop.f32.mrb[0].mxu0
    %361 = vmatprep.mubr.f32.mxu0 0.0
    %v362 = vand.u32 %v93, 4294901760
    %363 = vmatmul.mubr.f32.gmra.mrb[0].mxu0 %v362
    %v364 = vpop.f32.mrb[0].mxu0
    %v365 = vadd.f32 %v208, %v364
    %v366 = vpop.f32.mrb[0].mxu0
    %367 = vdwg.mxu0
    %368 = vmatprep.subr.mxu0 0.0
    %v369 = vand.u32 %v94, 4294901760
    %v370 = vsub.f32 %v94, %v369
    %371 = vmatpush1.msra.mxu0 %v370
    %372 = vmatprep.subr.mxu0 0.0
    %v373 = vand.u32 %v95, 4294901760
    %v374 = vsub.f32 %v95, %v373
    %375 = vmatpush1.msra.mxu0 %v374
    %376 = vmatprep.subr.mxu0 0.0
    %v377 = vand.u32 %v96, 4294901760
    %v378 = vsub.f32 %v96, %v377
    %379 = vmatpush1.msra.mxu0 %v378
    %380 = vmatprep.subr.mxu0 0.0
    %v381 = vand.u32 %v97, 4294901760
    %v382 = vsub.f32 %v97, %v381
    %383 = vmatpush1.msra.mxu0 %v382
    %384 = vmatprep.subr.mxu0 0.0
    %v385 = vand.u32 %v98, 4294901760
    %v386 = vsub.f32 %v98, %v385
    %387 = vmatpush1.msra.mxu0 %v386
    %388 = vmatprep.subr.mxu0 0.0
    %v389 = vand.u32 %v99, 4294901760
    %v390 = vsub.f32 %v99, %v389
    %391 = vmatpush1.msra.mxu0 %v390
    %392 = vmatprep.subr.mxu0 0.0
    %v393 = vand.u32 %v100, 4294901760
    %v394 = vsub.f32 %v100, %v393
    %395 = vmatpush1.msra.mxu0 %v394
    %396 = vmatprep.subr.mxu0 0.0
    %v397 = vand.u32 %v101, 4294901760
    %v398 = vsub.f32 %v101, %v397
    %399 = vmatpush1.msra.mxu0 %v398
    %400 = vmatprep.subr.mxu0 0.0
    %v401 = vand.u32 %v102, 4294901760
    %v402 = vsub.f32 %v102, %v401
    %403 = vmatpush1.msra.mxu0 %v402
    %404 = vmatprep.subr.mxu0 0.0
    %v405 = vand.u32 %v103, 4294901760
    %v406 = vsub.f32 %v103, %v405
    %407 = vmatpush1.msra.mxu0 %v406
    %408 = vmatprep.subr.mxu0 0.0
    %v409 = vand.u32 %v104, 4294901760
    %v410 = vsub.f32 %v104, %v409
    %411 = vmatpush1.msra.mxu0 %v410
    %412 = vmatprep.subr.mxu0 0.0
    %v413 = vand.u32 %v105, 4294901760
    %v414 = vsub.f32 %v105, %v413
    %415 = vmatpush1.msra.mxu0 %v414
    %416 = vmatprep.subr.mxu0 0.0
    %v417 = vand.u32 %v106, 4294901760
    %v418 = vsub.f32 %v106, %v417
    %419 = vmatpush1.msra.mxu0 %v418
    %420 = vmatprep.subr.mxu0 0.0
    %v421 = vand.u32 %v107, 4294901760
    %v422 = vsub.f32 %v107, %v421
    %423 = vmatpush1.msra.mxu0 %v422
    %424 = vmatprep.subr.mxu0 0.0
    %v425 = vand.u32 %v108, 4294901760
    %v426 = vsub.f32 %v108, %v425
    %427 = vmatpush1.msra.mxu0 %v426
    %428 = vmatprep.subr.mxu0 0.0
    %v429 = vand.u32 %v109, 4294901760
    %v430 = vsub.f32 %v109, %v429
    %431 = vmatpush1.msra.mxu0 %v430
    %432 = vmatprep.subr.mxu0 0.0
    %433 = vmatpush1.msra.mxu0 0.0
    %434 = vmatprep.subr.mxu0 0.0
    %435 = vmatpush1.msra.mxu0 0.0
    %436 = vmatprep.subr.mxu0 0.0
    %437 = vmatpush1.msra.mxu0 0.0
    %438 = vmatprep.subr.mxu0 0.0
    %439 = vmatpush1.msra.mxu0 0.0
    %440 = vmatprep.subr.mxu0 0.0
    %441 = vmatpush1.msra.mxu0 0.0
    %442 = vmatprep.subr.mxu0 0.0
    %443 = vmatpush1.msra.mxu0 0.0
    %444 = vmatprep.subr.mxu0 0.0
    %445 = vmatpush1.msra.mxu0 0.0
    %446 = vmatprep.subr.mxu0 0.0
    %447 = vmatpush1.msra.mxu0 0.0
    %448 = vmatprep.subr.mxu0 0.0
    %449 = vmatpush1.msra.mxu0 0.0
    %450 = vmatprep.subr.mxu0 0.0
    %451 = vmatpush1.msra.mxu0 0.0
    %452 = vmatprep.subr.mxu0 0.0
    %453 = vmatpush1.msra.mxu0 0.0
    %454 = vmatprep.subr.mxu0 0.0
    %455 = vmatpush1.msra.mxu0 0.0
    %456 = vmatprep.subr.mxu0 0.0
    %457 = vmatpush1.msra.mxu0 0.0
    %458 = vmatprep.subr.mxu0 0.0
    %459 = vmatpush1.msra.mxu0 0.0
    %460 = vmatprep.subr.mxu0 0.0
    %461 = vmatpush1.msra.mxu0 0.0
    %462 = vmatprep.subr.mxu0 0.0
    %463 = vmatpush1.msra.mxu0 0.0
    %464 = vmatprep.mubr.f32.mxu0 0.0
    %v465 = vand.u32 %v92, 4294901760
    %v466 = vsub.f32 %v92, %v465
    %467 = vmatmul.mubr.f32.gmra.mrb[0].mxu0 %v466
    %v468 = vpop.f32.mrb[0].mxu0
    %v469 = vadd.f32 %v359, %v468
    %v470 = vpop.f32.mrb[0].mxu0
    %471 = vmatprep.mubr.f32.mxu0 0.0
    %v472 = vand.u32 %v93, 4294901760
    %v473 = vsub.f32 %v93, %v472
    %474 = vmatmul.mubr.f32.gmra.mrb[0].mxu0 %v473
    %v475 = vpop.f32.mrb[0].mxu0
    %v476 = vadd.f32 %v365, %v475
    %v477 = vpop.f32.mrb[0].mxu0
    %478 = vdwg.mxu0
    %479 = vmatprep.subr.mxu0 0.0
    %v480 = vand.u32 %v94, 4294901760
    %481 = vmatpush1.msra.mxu0 %v480
    %482 = vmatprep.subr.mxu0 0.0
    %v483 = vand.u32 %v95, 4294901760
    %484 = vmatpush1.msra.mxu0 %v483
    %485 = vmatprep.subr.mxu0 0.0
    %v486 = vand.u32 %v96, 4294901760
    %487 = vmatpush1.msra.mxu0 %v486
    %488 = vmatprep.subr.mxu0 0.0
    %v489 = vand.u32 %v97, 4294901760
    %490 = vmatpush1.msra.mxu0 %v489
    %491 = vmatprep.subr.mxu0 0.0
    %v492 = vand.u32 %v98, 4294901760
    %493 = vmatpush1.msra.mxu0 %v492
    %494 = vmatprep.subr.mxu0 0.0
    %v495 = vand.u32 %v99, 4294901760
    %496 = vmatpush1.msra.mxu0 %v495
    %497 = vmatprep.subr.mxu0 0.0
    %v498 = vand.u32 %v100, 4294901760
    %499 = vmatpush1.msra.mxu0 %v498
    %500 = vmatprep.subr.mxu0 0.0
    %v501 = vand.u32 %v101, 4294901760
    %502 = vmatpush1.msra.mxu0 %v501
    %503 = vmatprep.subr.mxu0 0.0
    %v504 = vand.u32 %v102, 4294901760
    %505 = vmatpush1.msra.mxu0 %v504
    %506 = vmatprep.subr.mxu0 0.0
    %v507 = vand.u32 %v103, 4294901760
    %508 = vmatpush1.msra.mxu0 %v507
    %509 = vmatprep.subr.mxu0 0.0
    %v510 = vand.u32 %v104, 4294901760
    %511 = vmatpush1.msra.mxu0 %v510
    %512 = vmatprep.subr.mxu0 0.0
    %v513 = vand.u32 %v105, 4294901760
    %514 = vmatpush1.msra.mxu0 %v513
    %515 = vmatprep.subr.mxu0 0.0
    %v516 = vand.u32 %v106, 4294901760
    %517 = vmatpush1.msra.mxu0 %v516
    %518 = vmatprep.subr.mxu0 0.0
    %v519 = vand.u32 %v107, 4294901760
    %520 = vmatpush1.msra.mxu0 %v519
    %521 = vmatprep.subr.mxu0 0.0
    %v522 = vand.u32 %v108, 4294901760
    %523 = vmatpush1.msra.mxu0 %v522
    %524 = vmatprep.subr.mxu0 0.0
    %v525 = vand.u32 %v109, 4294901760
    %526 = vmatpush1.msra.mxu0 %v525
    %527 = vmatprep.subr.mxu0 0.0
    %528 = vmatpush1.msra.mxu0 0.0
    %529 = vmatprep.subr.mxu0 0.0
    %530 = vmatpush1.msra.mxu0 0.0
    %531 = vmatprep.subr.mxu0 0.0
    %532 = vmatpush1.msra.mxu0 0.0
    %533 = vmatprep.subr.mxu0 0.0
    %534 = vmatpush1.msra.mxu0 0.0
    %535 = vmatprep.subr.mxu0 0.0
    %536 = vmatpush1.msra.mxu0 0.0
    %537 = vmatprep.subr.mxu0 0.0
    %538 = vmatpush1.msra.mxu0 0.0
    %539 = vmatprep.subr.mxu0 0.0
    %540 = vmatpush1.msra.mxu0 0.0
    %541 = vmatprep.subr.mxu0 0.0
    %542 = vmatpush1.msra.mxu0 0.0
    %543 = vmatprep.subr.mxu0 0.0
    %544 = vmatpush1.msra.mxu0 0.0
    %545 = vmatprep.subr.mxu0 0.0
    %546 = vmatpush1.msra.mxu0 0.0
    %547 = vmatprep.subr.mxu0 0.0
    %548 = vmatpush1.msra.mxu0 0.0
    %549 = vmatprep.subr.mxu0 0.0
    %550 = vmatpush1.msra.mxu0 0.0
    %551 = vmatprep.subr.mxu0 0.0
    %552 = vmatpush1.msra.mxu0 0.0
    %553 = vmatprep.subr.mxu0 0.0
    %554 = vmatpush1.msra.mxu0 0.0
    %555 = vmatprep.subr.mxu0 0.0
    %556 = vmatpush1.msra.mxu0 0.0
    %557 = vmatprep.subr.mxu0 0.0
    %558 = vmatpush1.msra.mxu0 0.0
    %559 = vmatprep.mubr.f32.mxu0 0.0
    %v560 = vand.u32 %v92, 4294901760
    %v561 = vsub.f32 %v92, %v560
    %v562 = vand.u32 %v561, 4294901760
    %563 = vmatmul.mubr.f32.gmra.mrb[0].mxu0 %v562
    %v564 = vpop.f32.mrb[0].mxu0
    %v565 = vadd.f32 %v469, %v564
    %v566 = vpop.f32.mrb[0].mxu0
    %567 = vmatprep.mubr.f32.mxu0 0.0
    %v568 = vand.u32 %v93, 4294901760
    %v569 = vsub.f32 %v93, %v568
    %v570 = vand.u32 %v569, 4294901760
    %571 = vmatmul.mubr.f32.gmra.mrb[0].mxu0 %v570
    %v572 = vpop.f32.mrb[0].mxu0
    %v573 = vadd.f32 %v476, %v572
    %v574 = vpop.f32.mrb[0].mxu0
    %575 = vdwg.mxu0
    %576 = vmatprep.subr.mxu0 0.0
    %v577 = vand.u32 %v94, 4294901760
    %v578 = vsub.f32 %v94, %v577
    %v579 = vand.u32 %v578, 4294901760
    %580 = vmatpush1.msra.mxu0 %v579
    %581 = vmatprep.subr.mxu0 0.0
    %v582 = vand.u32 %v95, 4294901760
    %v583 = vsub.f32 %v95, %v582
    %v584 = vand.u32 %v583, 4294901760
    %585 = vmatpush1.msra.mxu0 %v584
    %586 = vmatprep.subr.mxu0 0.0
    %v587 = vand.u32 %v96, 4294901760
    %v588 = vsub.f32 %v96, %v587
    %v589 = vand.u32 %v588, 4294901760
    %590 = vmatpush1.msra.mxu0 %v589
    %591 = vmatprep.subr.mxu0 0.0
    %v592 = vand.u32 %v97, 4294901760
    %v593 = vsub.f32 %v97, %v592
    %v594 = vand.u32 %v593, 4294901760
    %595 = vmatpush1.msra.mxu0 %v594
    %596 = vmatprep.subr.mxu0 0.0
    %v597 = vand.u32 %v98, 4294901760
    %v598 = vsub.f32 %v98, %v597
    %v599 = vand.u32 %v598, 4294901760
    %600 = vmatpush1.msra.mxu0 %v599
    %601 = vmatprep.subr.mxu0 0.0
    %v602 = vand.u32 %v99, 4294901760
    %v603 = vsub.f32 %v99, %v602
    %v604 = vand.u32 %v603, 4294901760
    %605 = vmatpush1.msra.mxu0 %v604
    %606 = vmatprep.subr.mxu0 0.0
    %v607 = vand.u32 %v100, 4294901760
    %v608 = vsub.f32 %v100, %v607
    %v609 = vand.u32 %v608, 4294901760
    %610 = vmatpush1.msra.mxu0 %v609
    %611 = vmatprep.subr.mxu0 0.0
    %v612 = vand.u32 %v101, 4294901760
    %v613 = vsub.f32 %v101, %v612
    %v614 = vand.u32 %v613, 4294901760
    %615 = vmatpush1.msra.mxu0 %v614
    %616 = vmatprep.subr.mxu0 0.0
    %v617 = vand.u32 %v102, 4294901760
    %v618 = vsub.f32 %v102, %v617
    %v619 = vand.u32 %v618, 4294901760
    %620 = vmatpush1.msra.mxu0 %v619
    %621 = vmatprep.subr.mxu0 0.0
    %v622 = vand.u32 %v103, 4294901760
    %v623 = vsub.f32 %v103, %v622
    %v624 = vand.u32 %v623, 4294901760
    %625 = vmatpush1.msra.mxu0 %v624
    %626 = vmatprep.subr.mxu0 0.0
    %v627 = vand.u32 %v104, 4294901760
    %v628 = vsub.f32 %v104, %v627
    %v629 = vand.u32 %v628, 4294901760
    %630 = vmatpush1.msra.mxu0 %v629
    %631 = vmatprep.subr.mxu0 0.0
    %v632 = vand.u32 %v105, 4294901760
    %v633 = vsub.f32 %v105, %v632
    %v634 = vand.u32 %v633, 4294901760
    %635 = vmatpush1.msra.mxu0 %v634
    %636 = vmatprep.subr.mxu0 0.0
    %v637 = vand.u32 %v106, 4294901760
    %v638 = vsub.f32 %v106, %v637
    %v639 = vand.u32 %v638, 4294901760
    %640 = vmatpush1.msra.mxu0 %v639
    %641 = vmatprep.subr.mxu0 0.0
    %v642 = vand.u32 %v107, 4294901760
    %v643 = vsub.f32 %v107, %v642
    %v644 = vand.u32 %v643, 4294901760
    %645 = vmatpush1.msra.mxu0 %v644
    %646 = vmatprep.subr.mxu0 0.0
    %v647 = vand.u32 %v108, 4294901760
    %v648 = vsub.f32 %v108, %v647
    %v649 = vand.u32 %v648, 4294901760
    %650 = vmatpush1.msra.mxu0 %v649
    %651 = vmatprep.subr.mxu0 0.0
    %v652 = vand.u32 %v109, 4294901760
    %v653 = vsub.f32 %v109, %v652
    %v654 = vand.u32 %v653, 4294901760
    %655 = vmatpush1.msra.mxu0 %v654
    %656 = vmatprep.subr.mxu0 0.0
    %657 = vmatpush1.msra.mxu0 0.0
    %658 = vmatprep.subr.mxu0 0.0
    %659 = vmatpush1.msra.mxu0 0.0
    %660 = vmatprep.subr.mxu0 0.0
    %661 = vmatpush1.msra.mxu0 0.0
    %662 = vmatprep.subr.mxu0 0.0
    %663 = vmatpush1.msra.mxu0 0.0
    %664 = vmatprep.subr.mxu0 0.0
    %665 = vmatpush1.msra.mxu0 0.0
    %666 = vmatprep.subr.mxu0 0.0
    %667 = vmatpush1.msra.mxu0 0.0
    %668 = vmatprep.subr.mxu0 0.0
    %669 = vmatpush1.msra.mxu0 0.0
    %670 = vmatprep.subr.mxu0 0.0
    %671 = vmatpush1.msra.mxu0 0.0
    %672 = vmatprep.subr.mxu0 0.0
    %673 = vmatpush1.msra.mxu0 0.0
    %674 = vmatprep.subr.mxu0 0.0
    %675 = vmatpush1.msra.mxu0 0.0
    %676 = vmatprep.subr.mxu0 0.0
    %677 = vmatpush1.msra.mxu0 0.0
    %678 = vmatprep.subr.mxu0 0.0
    %679 = vmatpush1.msra.mxu0 0.0
    %680 = vmatprep.subr.mxu0 0.0
    %681 = vmatpush1.msra.mxu0 0.0
    %682 = vmatprep.subr.mxu0 0.0
    %683 = vmatpush1.msra.mxu0 0.0
    %684 = vmatprep.subr.mxu0 0.0
    %685 = vmatpush1.msra.mxu0 0.0
    %686 = vmatprep.subr.mxu0 0.0
    %687 = vmatpush1.msra.mxu0 0.0
    %688 = vmatprep.mubr.f32.mxu0 0.0
    %v689 = vand.u32 %v92, 4294901760
    %690 = vmatmul.mubr.f32.gmra.mrb[0].mxu0 %v689
    %v691 = vpop.f32.mrb[0].mxu0
    %v692 = vadd.f32 %v565, %v691
    %v693 = vpop.f32.mrb[0].mxu0
    %694 = vmatprep.mubr.f32.mxu0 0.0
    %v695 = vand.u32 %v93, 4294901760
    %696 = vmatmul.mubr.f32.gmra.mrb[0].mxu0 %v695
    %v697 = vpop.f32.mrb[0].mxu0
    %v698 = vadd.f32 %v573, %v697
    %v699 = vpop.f32.mrb[0].mxu0
    %700 = vdwg.mxu0
    %701 = vmatprep.subr.mxu0 0.0
    %v702 = vand.u32 %v94, 4294901760
    %703 = vmatpush1.msra.mxu0 %v702
    %704 = vmatprep.subr.mxu0 0.0
    %v705 = vand.u32 %v95, 4294901760
    %706 = vmatpush1.msra.mxu0 %v705
    %707 = vmatprep.subr.mxu0 0.0
    %v708 = vand.u32 %v96, 4294901760
    %709 = vmatpush1.msra.mxu0 %v708
    %710 = vmatprep.subr.mxu0 0.0
    %v711 = vand.u32 %v97, 4294901760
    %712 = vmatpush1.msra.mxu0 %v711
    %713 = vmatprep.subr.mxu0 0.0
    %v714 = vand.u32 %v98, 4294901760
    %715 = vmatpush1.msra.mxu0 %v714
    %716 = vmatprep.subr.mxu0 0.0
    %v717 = vand.u32 %v99, 4294901760
    %718 = vmatpush1.msra.mxu0 %v717
    %719 = vmatprep.subr.mxu0 0.0
    %v720 = vand.u32 %v100, 4294901760
    %721 = vmatpush1.msra.mxu0 %v720
    %722 = vmatprep.subr.mxu0 0.0
    %v723 = vand.u32 %v101, 4294901760
    %724 = vmatpush1.msra.mxu0 %v723
    %725 = vmatprep.subr.mxu0 0.0
    %v726 = vand.u32 %v102, 4294901760
    %727 = vmatpush1.msra.mxu0 %v726
    %728 = vmatprep.subr.mxu0 0.0
    %v729 = vand.u32 %v103, 4294901760
    %730 = vmatpush1.msra.mxu0 %v729
    %731 = vmatprep.subr.mxu0 0.0
    %v732 = vand.u32 %v104, 4294901760
    %733 = vmatpush1.msra.mxu0 %v732
    %734 = vmatprep.subr.mxu0 0.0
    %v735 = vand.u32 %v105, 4294901760
    %736 = vmatpush1.msra.mxu0 %v735
    %737 = vmatprep.subr.mxu0 0.0
    %v738 = vand.u32 %v106, 4294901760
    %739 = vmatpush1.msra.mxu0 %v738
    %740 = vmatprep.subr.mxu0 0.0
    %v741 = vand.u32 %v107, 4294901760
    %742 = vmatpush1.msra.mxu0 %v741
    %743 = vmatprep.subr.mxu0 0.0
    %v744 = vand.u32 %v108, 4294901760
    %745 = vmatpush1.msra.mxu0 %v744
    %746 = vmatprep.subr.mxu0 0.0
    %v747 = vand.u32 %v109, 4294901760
    %748 = vmatpush1.msra.mxu0 %v747
    %749 = vmatprep.subr.mxu0 0.0
    %750 = vmatpush1.msra.mxu0 0.0
    %751 = vmatprep.subr.mxu0 0.0
    %752 = vmatpush1.msra.mxu0 0.0
    %753 = vmatprep.subr.mxu0 0.0
    %754 = vmatpush1.msra.mxu0 0.0
    %755 = vmatprep.subr.mxu0 0.0
    %756 = vmatpush1.msra.mxu0 0.0
    %757 = vmatprep.subr.mxu0 0.0
    %758 = vmatpush1.msra.mxu0 0.0
    %759 = vmatprep.subr.mxu0 0.0
    %760 = vmatpush1.msra.mxu0 0.0
    %761 = vmatprep.subr.mxu0 0.0
    %762 = vmatpush1.msra.mxu0 0.0
    %763 = vmatprep.subr.mxu0 0.0
    %764 = vmatpush1.msra.mxu0 0.0
    %765 = vmatprep.subr.mxu0 0.0
    %766 = vmatpush1.msra.mxu0 0.0
    %767 = vmatprep.subr.mxu0 0.0
    %768 = vmatpush1.msra.mxu0 0.0
    %769 = vmatprep.subr.mxu0 0.0
    %770 = vmatpush1.msra.mxu0 0.0
    %771 = vmatprep.subr.mxu0 0.0
    %772 = vmatpush1.msra.mxu0 0.0
    %773 = vmatprep.subr.mxu0 0.0
    %774 = vmatpush1.msra.mxu0 0.0
    %775 = vmatprep.subr.mxu0 0.0
    %776 = vmatpush1.msra.mxu0 0.0
    %777 = vmatprep.subr.mxu0 0.0
    %778 = vmatpush1.msra.mxu0 0.0
    %779 = vmatprep.subr.mxu0 0.0
    %780 = vmatpush1.msra.mxu0 0.0
    %781 = vmatprep.mubr.f32.mxu0 0.0
    %v782 = vand.u32 %v92, 4294901760
    %783 = vmatmul.mubr.f32.gmra.mrb[0].mxu0 %v782
    %v784 = vpop.f32.mrb[0].mxu0
    %v785 = vadd.f32 %v692, %v784
    %v786 = vpop.f32.mrb[0].mxu0
    %787 = vmatprep.mubr.f32.mxu0 0.0
    %v788 = vand.u32 %v93, 4294901760
    %789 = vmatmul.mubr.f32.gmra.mrb[0].mxu0 %v788
    %v790 = vpop.f32.mrb[0].mxu0
    %v791 = vadd.f32 %v698, %v790
    %v792 = vpop.f32.mrb[0].mxu0
    %793 = vdwg.mxu0
    %v794 = vld [vmem:[%s56] sm:$0xff]
    %v795 = vld [vmem:[%s56 + $0x8] sm:$0xff]
    %v796 = vadd.f32 %v794, 1e-06
    %v797 = vadd.f32 %v795, 1e-06
    %v798 = vmul.f32 %v796, %v796
    %v799 = vmul.f32 %v797, %v797
    %v800 = vmul.f32 %v794, %v794
    %v801 = vmul.f32 %v795, %v795
    %804 = vrot.lane.b32.xlu0 %v800, 127
    %v805 = vpop.permute.xlu0 %804
    %806 = vrot.lane.b32.xlu0 %v801, 127
    %v807 = vpop.permute.xlu0 %806
    %v810 = vadd.f32 %v798, %v805
    %v811 = vadd.f32 %v799, %v807
    %v812 = vrsqrt.pop %v810
    %v813 = vrsqrt.pop %v811
    %v814 = vmul.f32 %v785, %v785
    %v815 = vmul.f32 %v791, %v791
    %818 = vrot.lane.b32.xlu0 %v814, 127
    %v819 = vpop.permute.xlu0 %818
    %820 = vrot.lane.b32.xlu0 %v815, 127
    %v821 = vpop.permute.xlu0 %820
    %v824 = vadd.f32 %v814, %v819
    %v825 = vadd.f32 %v815, %v821
    %v826 = vrsqrt.pop %v824
    %v827 = vmul.f32 %v824, %v826
    %vm828 = vcmp.eq.f32.partialorder %v824, inf
    %v829 = vsel %vm828, %v824, %v827
    %vm830 = vcmp.eq.f32.partialorder %v824, 0.0
    %v831 = vand.u32 %v824, 2147483648
    %v832 = vsel %vm830, %v831, %v829
    %v833 = vrsqrt.pop %v825
    %v834 = vmul.f32 %v825, %v833
    %vm835 = vcmp.eq.f32.partialorder %v825, inf
    %v836 = vsel %vm835, %v825, %v834
    %vm837 = vcmp.eq.f32.partialorder %v825, 0.0
    %v838 = vand.u32 %v825, 2147483648
    %v839 = vsel %vm837, %v838, %v836
    %842 = vrot.lane.b32.xlu0 %v812, 127
    %v843 = vpop.permute.xlu0 %842
    %844 = vrot.lane.b32.xlu0 %v813, 127
    %v845 = vpop.permute.xlu0 %844
    %v848 = vmul.f32 %v832, %v843
    %v849 = vmul.f32 %v839, %v845
    %v850 = vmul.f32 %v848, %v794
    %v851 = vmul.f32 %v849, %v795
    %853 = vset.pattern.permute.xlu0 0
    %854 = vperm.xlu0 %853, %v850
    %v855 = vpop.permute.xlu0 %854
    %858 = vset.pattern.permute.xlu0 0
    %859 = vperm.xlu0 %858, %v851
    %v860 = vpop.permute.xlu0 %859
    %v862 = vmul.f32 %v855, %v92
    %v863 = vmul.f32 %v860, %v93
    %v864 = vld [vmem:[#allocation2] sm:$0xff]
    %v865 = vadd.f32 %v862, %v863
    %v866 = vadd.f32 %v864, %v865
    %867 = vst [vmem:[#allocation2] sm:$0xff] %v866
    // Predicated region
    $region18: #{tpu_custom_call.1} parent=1 // pred_check
      _
    $region19: #{tpu_custom_call.1} parent=1 // pred_check_branch
      %869 = sbr.rel (0) target = $region21
    $region20: #{tpu_custom_call.1} parent=1 // pred_region
      %s871 = ssub.s32 128, 128
      %872 = vsyncadd [#allocation3], %s871
      %s874 = sshll.u32 [#allocation2], 4
      %s875 = int_to_ptr.vmem [resolvable:$true] %s874
      %877 = dma.vmem_to_hbm [thread:$0]  %s875, 128, %s3, [#allocation3]
    $region21: #{tpu_custom_call.1} parent=1 // pred_fallthru
      _
    // Predicated region
    $region22: #{tpu_custom_call.1} parent=1 // pred_check
      _
    $region23: #{tpu_custom_call.1} parent=1 // pred_check_branch
      %879 = sbr.rel (0) target = $region25
    $region24: #{tpu_custom_call.1} parent=1 // pred_region
      %880 = dma.done [#allocation3], 128
    $region25: #{tpu_custom_call.1} parent=1 // pred_fallthru
      _
    %881 = vsyncpa [#allocation3], 1

</llo_original>
